<compile_context>
chip_gen: v5e
topology: v5e:2x2
jax: 0.10.0
libtpu: 0.0.40
codegen_flags: <defaults>
</compile_context>

<pallas_src>
import jax
import jax.numpy as jnp
from jax.experimental import pallas as pl
from jax.experimental.pallas import tpu as pltpu  # noqa: F401  (kept for TPU-specific tuning)

# ---------------- PointNet++ hyper-parameters (small, synthetic) -------------
SA_N_POINTS = [16, 8, None]
SA_N_SAMPLES = [8, 8, None]
SA_RADII = [0.4, 0.8, None]
SA_MLPS = [[3, 32, 32], [32, 32, 64], [64, 64, 128]]   # mlp[0] = feature chans
USE_XYZ = True
BN_EPS = 1e-5


# ---------------------------- Pallas kernels ---------------------------------
def sa_mlp_pallas(x, layers, P, S, B, fc=None):
    """Shared-MLP + max-pool (+ optional fused final Linear) of one SA module.

    x:      (B*S*P, Cin) float32, row index = b*(S*P) + s*P + p.
    layers: list of (W (Cin_l, Cout_l) with BN scale folded in, shift (1, Cout_l)).
    fc:     optional (fc_w (P*Cout, O), fc_b (1, O)); only used when P == 1.
    returns (B*P, Cout_last) float32, or (B, O) float32 when fc is given.
    """
    R = S * P
    n_layers = len(layers)
    Cout = layers[-1][0].shape[1]

    flat_params = []
    for (W, sh) in layers:
        flat_params += [W, sh]
    if fc is not None:
        assert P == 1, "final Linear fusion only implemented for GroupAll (P==1)"
        fc_w, fc_b = fc
        flat_params += [fc_w, fc_b]
        out_shape = jax.ShapeDtypeStruct((B, fc_w.shape[1]), jnp.float32)
    else:
        out_shape = jax.ShapeDtypeStruct((B * P, Cout), jnp.float32)

    def kernel(x_ref, *refs):
        out_ref = refs[-1]
        h = x_ref[...]                                         # (B*R, Cin) f32
        for l in range(n_layers):
            W = refs[2 * l][...].astype(jnp.bfloat16)          # BN scale pre-folded
            sh = refs[2 * l + 1][...]                          # (1, Cout) f32
            y = jnp.dot(h.astype(jnp.bfloat16), W,
                        preferred_element_type=jnp.float32)    # 1x1 conv (MXU, f32 acc)
            h = jnp.maximum(y + sh, 0.0)                       # BN shift + ReLU (f32)
        if fc is not None:
            fw = refs[2 * n_layers][...].astype(jnp.bfloat16)  # (P*Cout, O)
            fb = refs[2 * n_layers + 1][...]                   # (1, O)
        # max-pool over the nsample axis (static slices), per batch element
        for b in range(B):
            base = b * R
            m = h[base:base + P, :]
            for s in range(1, S):
                m = jnp.maximum(m, h[base + s * P: base + (s + 1) * P, :])
            if fc is not None:
                # P == 1  =>  m is already the flattened (1, P*Cout) feature row
                y = jnp.dot(m.astype(jnp.bfloat16), fw,
                            preferred_element_type=jnp.float32) + fb
                out_ref[b:b + 1, :] = y
            else:
                out_ref[b * P:(b + 1) * P, :] = m

    # Single invocation, no grid: every operand (<< 1 MiB total) lives whole in VMEM.
    return pl.pallas_call(kernel, out_shape=out_shape)(x, *flat_params)


# ------------------------- plain-JAX glue (sampling / grouping) --------------
def furthest_point_sample(xyz, npoint):
    """xyz (B, N, 3) -> indices (B, npoint). Matches pointnet2 CUDA (start @ 0).

    Unrolled Python loop (npoint <= 16) so XLA can fuse the dependent steps.
    """
    B, N, _ = xyz.shape
    batch = jnp.arange(B)
    last = jnp.zeros((B,), jnp.int32)
    idx_list = [last]
    dists = jnp.full((B, N), 1e10, xyz.dtype)
    for _ in range(1, npoint):
        last_xyz = xyz[batch, last]                              # (B, 3)
        d = jnp.sum((xyz - last_xyz[:, None, :]) ** 2, axis=-1)  # (B, N)
        dists = jnp.minimum(dists, d)
        last = jnp.argmax(dists, axis=-1).astype(jnp.int32)
        idx_list.append(last)
    return jnp.stack(idx_list, axis=1)                           # (B, npoint)


def ball_query(xyz, new_xyz, radius, nsample):
    """xyz (B,N,3), new_xyz (B,P,3) -> (B,P,nsample) indices, pointnet2 semantics.

    Vectorized: one stable argsort puts in-radius points first in original
    order; empty slots are padded with the first in-radius point (the query
    center is always within radius since new_xyz is drawn from xyz).
    """
    d2 = jnp.sum((new_xyz[:, :, None, :] - xyz[:, None, :, :]) ** 2, axis=-1)
    within = d2 < radius * radius                                # (B, P, N)
    order = jnp.argsort((~within).astype(jnp.int32), axis=-1,
                        stable=True).astype(jnp.int32)           # in-radius first
    count = jnp.sum(within, axis=-1, keepdims=True)              # (B, P, 1)
    slots = order[..., :nsample]                                 # (B, P, S)
    valid = jnp.arange(nsample)[None, None, :] < count
    first = order[..., 0:1]
    return jnp.where(valid, slots, first)


def gather_points(points, idx):
    """points (B,N,C), idx (B,...) -> (B,...,C)."""
    return jax.vmap(lambda pts, ii: pts[ii])(points, idx)


def break_up_pc(pc):
    xyz = pc[..., 0:3]
    feats = pc[..., 3:] if pc.shape[-1] > 3 else None   # channel-last (B, N, C)
    return xyz, feats


def sa_module(xyz, feats, layers, npoint, nsample, radius, fc=None):
    B, N, _ = xyz.shape
    if npoint is not None:
        fps_idx = furthest_point_sample(xyz, npoint)
        new_xyz = gather_points(xyz, fps_idx)                         # (B, P, 3)
        idx = ball_query(xyz, new_xyz, radius, nsample)               # (B, P, S)
        idx_t = jnp.transpose(idx, (0, 2, 1))                         # (B, S, P) int32 (cheap)
        g_xyz = gather_points(xyz, idx_t) - new_xyz[:, None, :, :]    # centered (B, S, P, 3)
        if feats is not None and USE_XYZ:
            grouped = jnp.concatenate([g_xyz, gather_points(feats, idx_t)], axis=-1)
        elif feats is not None:
            grouped = gather_points(feats, idx_t)
        else:
            grouped = g_xyz
        P, S = npoint, nsample
    else:
        # GroupAll: no centering, one group containing every point.
        new_xyz = jnp.zeros((B, 1, 3), xyz.dtype)
        grouped = jnp.concatenate([xyz, feats], axis=-1)[:, :, None, :]   # (B, N, 1, 3+C)
        P, S = 1, N
    Cg = grouped.shape[-1]
    # contiguous reshape only (no float transpose): row = b*(S*P) + s*P + p
    x = grouped.reshape(B * S * P, Cg)
    out = sa_mlp_pallas(x, layers, P, S, B, fc=fc)
    if fc is not None:
        return new_xyz, out                     # (B, O) — final Linear fused
    return new_xyz, out.reshape(B, P, -1)       # (B, P, Cout)


def pointnetpp_forward(pc, params):
    """pc: (B, N_points, 3 + C) float32 -> (B, SA_MLPS[-1][-1])."""
    xyz, feats = break_up_pc(pc)
    n = len(SA_MLPS)
    for i in range(n - 1):
        xyz, feats = sa_module(
            xyz, feats, params["sa"][i],
            SA_N_POINTS[i], SA_N_SAMPLES[i], SA_RADII[i],
        )
    # Last module (GroupAll, P==1): final nn.Linear fused into the SA kernel.
    assert SA_N_POINTS[-1] is None, "fc fusion assumes the last module is GroupAll"
    _, out = sa_module(
        xyz, feats, params["sa"][n - 1],
        SA_N_POINTS[n - 1], SA_N_SAMPLES[n - 1], SA_RADII[n - 1],
        fc=(params["fc_w"], params["fc_b"]),
    )
    return out


# --------------------------- deterministic params ----------------------------
def init_params(key):
    params = {"sa": []}
    keys = jax.random.split(key, 16)
    ki = 0
    for mlp in SA_MLPS:
        chans = [mlp[0] + (3 if USE_XYZ else 0)] + list(mlp[1:])
        layers = []
        for cin, cout in zip(chans[:-1], chans[1:]):
            kw, kg, kb = jax.random.split(keys[ki], 3)
            ki += 1
            W = jax.random.normal(kw, (cin, cout), jnp.float32) * (2.0 / cin) ** 0.5
            gamma = 1.0 + 0.1 * jax.random.normal(kg, (1, cout), jnp.float32)
            beta = 0.1 * jax.random.normal(kb, (1, cout), jnp.float32)
            # eval-mode BN with init running stats (mean=0, var=1) folded into W:
            #   (x @ W) * gamma/sqrt(1+eps) + beta  ==  x @ (W * scale) + beta
            scale = gamma / jnp.sqrt(1.0 + BN_EPS)
            layers.append((W * scale, beta))
        params["sa"].append(layers)
    kw, kb = jax.random.split(keys[ki], 2)
    out_n_points = SA_N_POINTS[-1] if SA_N_POINTS[-1] is not None else 1
    fin = out_n_points * SA_MLPS[-1][-1]
    fout = SA_MLPS[-1][-1]
    params["fc_w"] = jax.random.normal(kw, (fin, fout), jnp.float32) * (1.0 / fin) ** 0.5
    params["fc_b"] = 0.01 * jax.random.normal(kb, (1, fout), jnp.float32)
    return params


# ------------------------------------ main -----------------------------------
if __name__ == "__main__":
    key = jax.random.PRNGKey(0)
    k_pc, k_par = jax.random.split(key)

    B, N_POINTS, C_FEAT = 2, 32, 3                       # pc = xyz(3) + feats(3)
    pc = jax.random.uniform(k_pc, (B, N_POINTS, 3 + C_FEAT), jnp.float32)
    params = init_params(k_par)

    forward = jax.jit(pointnetpp_forward)                # fuses all glue dispatches
    out = forward(pc, params)
    out = jax.block_until_ready(out)

    assert out.shape == (B, SA_MLPS[-1][-1]), out.shape
    assert jnp.all(jnp.isfinite(out))
    print("KERNEL_OK")
</pallas_src>

<mosaic_0001>
module attributes {stable_mosaic.version = 11 : i64} {
  func.func @kernel(%arg0: memref<256x6xf32, #tpu.memory_space<vmem>>, %arg1: memref<6x32xf32, #tpu.memory_space<vmem>>, %arg2: memref<1x32xf32, #tpu.memory_space<vmem>>, %arg3: memref<32x32xf32, #tpu.memory_space<vmem>>, %arg4: memref<1x32xf32, #tpu.memory_space<vmem>>, %arg5: memref<32x32xf32, #tpu.memory_space<vmem>>) attributes {dimension_semantics = [], scalar_prefetch = 0 : i64, scratch_operands = 0 : i64, tpu.core_type = #tpu.core_type<tc>} {
    %c0 = arith.constant 0 : index
    %c0_0 = arith.constant 0 : index
    %0 = vector.load %arg0[%c0, %c0_0] : memref<256x6xf32, #tpu.memory_space<vmem>>, vector<256x6xf32>
    %c0_1 = arith.constant 0 : index
    %c0_2 = arith.constant 0 : index
    %1 = vector.load %arg1[%c0_1, %c0_2] : memref<6x32xf32, #tpu.memory_space<vmem>>, vector<6x32xf32>
    %2 = arith.truncf %1 : vector<6x32xf32> to vector<6x32xbf16>
    %c0_3 = arith.constant 0 : index
    %c0_4 = arith.constant 0 : index
    %3 = vector.load %arg2[%c0_3, %c0_4] : memref<1x32xf32, #tpu.memory_space<vmem>>, vector<1x32xf32>
    %4 = arith.truncf %0 : vector<256x6xf32> to vector<256x6xbf16>
    %cst = arith.constant dense<0.000000e+00> : vector<256x32xf32>
    %5 = tpu.matmul %4, %2, %cst {dimension_numbers = #tpu.dot_dimension_numbers<[1], [0], [0], [1], [0, 0, 1, 1], [], []>} : vector<256x6xbf16>, vector<6x32xbf16>, vector<256x32xf32> -> vector<256x32xf32>
    %6 = vector.broadcast %3 : vector<1x32xf32> to vector<256x32xf32>
    %7 = arith.addf %5, %6 : vector<256x32xf32>
    %cst_5 = arith.constant 0.000000e+00 : f32
    %8 = vector.broadcast %cst_5 : f32 to vector<256x32xf32>
    %9 = arith.maximumf %7, %8 : vector<256x32xf32>
    %c0_6 = arith.constant 0 : index
    %c0_7 = arith.constant 0 : index
    %10 = vector.load %arg3[%c0_6, %c0_7] : memref<32x32xf32, #tpu.memory_space<vmem>>, vector<32x32xf32>
    %11 = arith.truncf %10 : vector<32x32xf32> to vector<32x32xbf16>
    %c0_8 = arith.constant 0 : index
    %c0_9 = arith.constant 0 : index
    %12 = vector.load %arg4[%c0_8, %c0_9] : memref<1x32xf32, #tpu.memory_space<vmem>>, vector<1x32xf32>
    %13 = arith.truncf %9 : vector<256x32xf32> to vector<256x32xbf16>
    %cst_10 = arith.constant dense<0.000000e+00> : vector<256x32xf32>
    %14 = tpu.matmul %13, %11, %cst_10 {dimension_numbers = #tpu.dot_dimension_numbers<[1], [0], [0], [1], [0, 0, 1, 1], [], []>} : vector<256x32xbf16>, vector<32x32xbf16>, vector<256x32xf32> -> vector<256x32xf32>
    %15 = vector.broadcast %12 : vector<1x32xf32> to vector<256x32xf32>
    %16 = arith.addf %14, %15 : vector<256x32xf32>
    %cst_11 = arith.constant 0.000000e+00 : f32
    %17 = vector.broadcast %cst_11 : f32 to vector<256x32xf32>
    %18 = arith.maximumf %16, %17 : vector<256x32xf32>
    %19 = vector.extract_strided_slice %18 {offsets = [0, 0], sizes = [16, 32], strides = [1, 1]} : vector<256x32xf32> to vector<16x32xf32>
    %20 = vector.extract_strided_slice %18 {offsets = [16, 0], sizes = [16, 32], strides = [1, 1]} : vector<256x32xf32> to vector<16x32xf32>
    %21 = arith.maximumf %19, %20 : vector<16x32xf32>
    %22 = vector.extract_strided_slice %18 {offsets = [32, 0], sizes = [16, 32], strides = [1, 1]} : vector<256x32xf32> to vector<16x32xf32>
    %23 = arith.maximumf %21, %22 : vector<16x32xf32>
    %24 = vector.extract_strided_slice %18 {offsets = [48, 0], sizes = [16, 32], strides = [1, 1]} : vector<256x32xf32> to vector<16x32xf32>
    %25 = arith.maximumf %23, %24 : vector<16x32xf32>
    %26 = vector.extract_strided_slice %18 {offsets = [64, 0], sizes = [16, 32], strides = [1, 1]} : vector<256x32xf32> to vector<16x32xf32>
    %27 = arith.maximumf %25, %26 : vector<16x32xf32>
    %28 = vector.extract_strided_slice %18 {offsets = [80, 0], sizes = [16, 32], strides = [1, 1]} : vector<256x32xf32> to vector<16x32xf32>
    %29 = arith.maximumf %27, %28 : vector<16x32xf32>
    %30 = vector.extract_strided_slice %18 {offsets = [96, 0], sizes = [16, 32], strides = [1, 1]} : vector<256x32xf32> to vector<16x32xf32>
    %31 = arith.maximumf %29, %30 : vector<16x32xf32>
    %32 = vector.extract_strided_slice %18 {offsets = [112, 0], sizes = [16, 32], strides = [1, 1]} : vector<256x32xf32> to vector<16x32xf32>
    %33 = arith.maximumf %31, %32 : vector<16x32xf32>
    %c0_12 = arith.constant 0 : index
    %c0_13 = arith.constant 0 : index
    %34 = vector.load %arg5[%c0_12, %c0_13] : memref<32x32xf32, #tpu.memory_space<vmem>>, vector<16x32xf32>
    tpu.vector_store %arg5[%c0_12, %c0_13], %33 {strides = array<i32>} : memref<32x32xf32, #tpu.memory_space<vmem>>, vector<16x32xf32>,
    %35 = vector.extract_strided_slice %18 {offsets = [128, 0], sizes = [16, 32], strides = [1, 1]} : vector<256x32xf32> to vector<16x32xf32>
    %36 = vector.extract_strided_slice %18 {offsets = [144, 0], sizes = [16, 32], strides = [1, 1]} : vector<256x32xf32> to vector<16x32xf32>
    %37 = arith.maximumf %35, %36 : vector<16x32xf32>
    %38 = vector.extract_strided_slice %18 {offsets = [160, 0], sizes = [16, 32], strides = [1, 1]} : vector<256x32xf32> to vector<16x32xf32>
    %39 = arith.maximumf %37, %38 : vector<16x32xf32>
    %40 = vector.extract_strided_slice %18 {offsets = [176, 0], sizes = [16, 32], strides = [1, 1]} : vector<256x32xf32> to vector<16x32xf32>
    %41 = arith.maximumf %39, %40 : vector<16x32xf32>
    %42 = vector.extract_strided_slice %18 {offsets = [192, 0], sizes = [16, 32], strides = [1, 1]} : vector<256x32xf32> to vector<16x32xf32>
    %43 = arith.maximumf %41, %42 : vector<16x32xf32>
    %44 = vector.extract_strided_slice %18 {offsets = [208, 0], sizes = [16, 32], strides = [1, 1]} : vector<256x32xf32> to vector<16x32xf32>
    %45 = arith.maximumf %43, %44 : vector<16x32xf32>
    %46 = vector.extract_strided_slice %18 {offsets = [224, 0], sizes = [16, 32], strides = [1, 1]} : vector<256x32xf32> to vector<16x32xf32>
    %47 = arith.maximumf %45, %46 : vector<16x32xf32>
    %48 = vector.extract_strided_slice %18 {offsets = [240, 0], sizes = [16, 32], strides = [1, 1]} : vector<256x32xf32> to vector<16x32xf32>
    %49 = arith.maximumf %47, %48 : vector<16x32xf32>
    %c16 = arith.constant 16 : index
    %c0_14 = arith.constant 0 : index
    %50 = vector.load %arg5[%c16, %c0_14] : memref<32x32xf32, #tpu.memory_space<vmem>>, vector<16x32xf32>
    tpu.vector_store %arg5[%c16, %c0_14], %49 {strides = array<i32>} : memref<32x32xf32, #tpu.memory_space<vmem>>, vector<16x32xf32>,
    return
  }
}

module attributes {stable_mosaic.version = 11 : i64} {
  func.func @kernel(%arg0: memref<128x35xf32, #tpu.memory_space<vmem>>, %arg1: memref<35x32xf32, #tpu.memory_space<vmem>>, %arg2: memref<1x32xf32, #tpu.memory_space<vmem>>, %arg3: memref<32x64xf32, #tpu.memory_space<vmem>>, %arg4: memref<1x64xf32, #tpu.memory_space<vmem>>, %arg5: memref<16x64xf32, #tpu.memory_space<vmem>>) attributes {dimension_semantics = [], scalar_prefetch = 0 : i64, scratch_operands = 0 : i64, tpu.core_type = #tpu.core_type<tc>} {
    %c0 = arith.constant 0 : index
    %c0_0 = arith.constant 0 : index
    %0 = vector.load %arg0[%c0, %c0_0] : memref<128x35xf32, #tpu.memory_space<vmem>>, vector<128x35xf32>
    %c0_1 = arith.constant 0 : index
    %c0_2 = arith.constant 0 : index
    %1 = vector.load %arg1[%c0_1, %c0_2] : memref<35x32xf32, #tpu.memory_space<vmem>>, vector<35x32xf32>
    %2 = arith.truncf %1 : vector<35x32xf32> to vector<35x32xbf16>
    %c0_3 = arith.constant 0 : index
    %c0_4 = arith.constant 0 : index
    %3 = vector.load %arg2[%c0_3, %c0_4] : memref<1x32xf32, #tpu.memory_space<vmem>>, vector<1x32xf32>
    %4 = arith.truncf %0 : vector<128x35xf32> to vector<128x35xbf16>
    %cst = arith.constant dense<0.000000e+00> : vector<128x32xf32>
    %5 = tpu.matmul %4, %2, %cst {dimension_numbers = #tpu.dot_dimension_numbers<[1], [0], [0], [1], [0, 0, 1, 1], [], []>} : vector<128x35xbf16>, vector<35x32xbf16>, vector<128x32xf32> -> vector<128x32xf32>
    %6 = vector.broadcast %3 : vector<1x32xf32> to vector<128x32xf32>
    %7 = arith.addf %5, %6 : vector<128x32xf32>
    %cst_5 = arith.constant 0.000000e+00 : f32
    %8 = vector.broadcast %cst_5 : f32 to vector<128x32xf32>
    %9 = arith.maximumf %7, %8 : vector<128x32xf32>
    %c0_6 = arith.constant 0 : index
    %c0_7 = arith.constant 0 : index
    %10 = vector.load %arg3[%c0_6, %c0_7] : memref<32x64xf32, #tpu.memory_space<vmem>>, vector<32x64xf32>
    %11 = arith.truncf %10 : vector<32x64xf32> to vector<32x64xbf16>
    %c0_8 = arith.constant 0 : index
    %c0_9 = arith.constant 0 : index
    %12 = vector.load %arg4[%c0_8, %c0_9] : memref<1x64xf32, #tpu.memory_space<vmem>>, vector<1x64xf32>
    %13 = arith.truncf %9 : vector<128x32xf32> to vector<128x32xbf16>
    %cst_10 = arith.constant dense<0.000000e+00> : vector<128x64xf32>
    %14 = tpu.matmul %13, %11, %cst_10 {dimension_numbers = #tpu.dot_dimension_numbers<[1], [0], [0], [1], [0, 0, 1, 1], [], []>} : vector<128x32xbf16>, vector<32x64xbf16>, vector<128x64xf32> -> vector<128x64xf32>
    %15 = vector.broadcast %12 : vector<1x64xf32> to vector<128x64xf32>
    %16 = arith.addf %14, %15 : vector<128x64xf32>
    %cst_11 = arith.constant 0.000000e+00 : f32
    %17 = vector.broadcast %cst_11 : f32 to vector<128x64xf32>
    %18 = arith.maximumf %16, %17 : vector<128x64xf32>
    %19 = vector.extract_strided_slice %18 {offsets = [0, 0], sizes = [8, 64], strides = [1, 1]} : vector<128x64xf32> to vector<8x64xf32>
    %20 = vector.extract_strided_slice %18 {offsets = [8, 0], sizes = [8, 64], strides = [1, 1]} : vector<128x64xf32> to vector<8x64xf32>
    %21 = arith.maximumf %19, %20 : vector<8x64xf32>
    %22 = vector.extract_strided_slice %18 {offsets = [16, 0], sizes = [8, 64], strides = [1, 1]} : vector<128x64xf32> to vector<8x64xf32>
    %23 = arith.maximumf %21, %22 : vector<8x64xf32>
    %24 = vector.extract_strided_slice %18 {offsets = [24, 0], sizes = [8, 64], strides = [1, 1]} : vector<128x64xf32> to vector<8x64xf32>
    %25 = arith.maximumf %23, %24 : vector<8x64xf32>
    %26 = vector.extract_strided_slice %18 {offsets = [32, 0], sizes = [8, 64], strides = [1, 1]} : vector<128x64xf32> to vector<8x64xf32>
    %27 = arith.maximumf %25, %26 : vector<8x64xf32>
    %28 = vector.extract_strided_slice %18 {offsets = [40, 0], sizes = [8, 64], strides = [1, 1]} : vector<128x64xf32> to vector<8x64xf32>
    %29 = arith.maximumf %27, %28 : vector<8x64xf32>
    %30 = vector.extract_strided_slice %18 {offsets = [48, 0], sizes = [8, 64], strides = [1, 1]} : vector<128x64xf32> to vector<8x64xf32>
    %31 = arith.maximumf %29, %30 : vector<8x64xf32>
    %32 = vector.extract_strided_slice %18 {offsets = [56, 0], sizes = [8, 64], strides = [1, 1]} : vector<128x64xf32> to vector<8x64xf32>
    %33 = arith.maximumf %31, %32 : vector<8x64xf32>
    %c0_12 = arith.constant 0 : index
    %c0_13 = arith.constant 0 : index
    %34 = vector.load %arg5[%c0_12, %c0_13] : memref<16x64xf32, #tpu.memory_space<vmem>>, vector<8x64xf32>
    tpu.vector_store %arg5[%c0_12, %c0_13], %33 {strides = array<i32>} : memref<16x64xf32, #tpu.memory_space<vmem>>, vector<8x64xf32>,
    %35 = vector.extract_strided_slice %18 {offsets = [64, 0], sizes = [8, 64], strides = [1, 1]} : vector<128x64xf32> to vector<8x64xf32>
    %36 = vector.extract_strided_slice %18 {offsets = [72, 0], sizes = [8, 64], strides = [1, 1]} : vector<128x64xf32> to vector<8x64xf32>
    %37 = arith.maximumf %35, %36 : vector<8x64xf32>
    %38 = vector.extract_strided_slice %18 {offsets = [80, 0], sizes = [8, 64], strides = [1, 1]} : vector<128x64xf32> to vector<8x64xf32>
    %39 = arith.maximumf %37, %38 : vector<8x64xf32>
    %40 = vector.extract_strided_slice %18 {offsets = [88, 0], sizes = [8, 64], strides = [1, 1]} : vector<128x64xf32> to vector<8x64xf32>
    %41 = arith.maximumf %39, %40 : vector<8x64xf32>
    %42 = vector.extract_strided_slice %18 {offsets = [96, 0], sizes = [8, 64], strides = [1, 1]} : vector<128x64xf32> to vector<8x64xf32>
    %43 = arith.maximumf %41, %42 : vector<8x64xf32>
    %44 = vector.extract_strided_slice %18 {offsets = [104, 0], sizes = [8, 64], strides = [1, 1]} : vector<128x64xf32> to vector<8x64xf32>
    %45 = arith.maximumf %43, %44 : vector<8x64xf32>
    %46 = vector.extract_strided_slice %18 {offsets = [112, 0], sizes = [8, 64], strides = [1, 1]} : vector<128x64xf32> to vector<8x64xf32>
    %47 = arith.maximumf %45, %46 : vector<8x64xf32>
    %48 = vector.extract_strided_slice %18 {offsets = [120, 0], sizes = [8, 64], strides = [1, 1]} : vector<128x64xf32> to vector<8x64xf32>
    %49 = arith.maximumf %47, %48 : vector<8x64xf32>
    %c8 = arith.constant 8 : index
    %c0_14 = arith.constant 0 : index
    %50 = vector.load %arg5[%c8, %c0_14] : memref<16x64xf32, #tpu.memory_space<vmem>>, vector<8x64xf32>
    tpu.vector_store %arg5[%c8, %c0_14], %49 {strides = array<i32>} : memref<16x64xf32, #tpu.memory_space<vmem>>, vector<8x64xf32>,
    return
  }
}

module attributes {stable_mosaic.version = 11 : i64} {
  func.func @kernel(%arg0: memref<16x67xf32, #tpu.memory_space<vmem>>, %arg1: memref<67x64xf32, #tpu.memory_space<vmem>>, %arg2: memref<1x64xf32, #tpu.memory_space<vmem>>, %arg3: memref<64x128xf32, #tpu.memory_space<vmem>>, %arg4: memref<1x128xf32, #tpu.memory_space<vmem>>, %arg5: memref<128x128xf32, #tpu.memory_space<vmem>>, %arg6: memref<1x128xf32, #tpu.memory_space<vmem>>, %arg7: memref<2x128xf32, #tpu.memory_space<vmem>>) attributes {dimension_semantics = [], scalar_prefetch = 0 : i64, scratch_operands = 0 : i64, tpu.core_type = #tpu.core_type<tc>} {
    %c0 = arith.constant 0 : index
    %c0_0 = arith.constant 0 : index
    %0 = vector.load %arg0[%c0, %c0_0] : memref<16x67xf32, #tpu.memory_space<vmem>>, vector<16x67xf32>
    %c0_1 = arith.constant 0 : index
    %c0_2 = arith.constant 0 : index
    %1 = vector.load %arg1[%c0_1, %c0_2] : memref<67x64xf32, #tpu.memory_space<vmem>>, vector<67x64xf32>
    %2 = arith.truncf %1 : vector<67x64xf32> to vector<67x64xbf16>
    %c0_3 = arith.constant 0 : index
    %c0_4 = arith.constant 0 : index
    %3 = vector.load %arg2[%c0_3, %c0_4] : memref<1x64xf32, #tpu.memory_space<vmem>>, vector<1x64xf32>
    %4 = arith.truncf %0 : vector<16x67xf32> to vector<16x67xbf16>
    %cst = arith.constant dense<0.000000e+00> : vector<16x64xf32>
    %5 = tpu.matmul %4, %2, %cst {dimension_numbers = #tpu.dot_dimension_numbers<[1], [0], [0], [1], [0, 0, 1, 1], [], []>} : vector<16x67xbf16>, vector<67x64xbf16>, vector<16x64xf32> -> vector<16x64xf32>
    %6 = vector.broadcast %3 : vector<1x64xf32> to vector<16x64xf32>
    %7 = arith.addf %5, %6 : vector<16x64xf32>
    %cst_5 = arith.constant 0.000000e+00 : f32
    %8 = vector.broadcast %cst_5 : f32 to vector<16x64xf32>
    %9 = arith.maximumf %7, %8 : vector<16x64xf32>
    %c0_6 = arith.constant 0 : index
    %c0_7 = arith.constant 0 : index
    %10 = vector.load %arg3[%c0_6, %c0_7] : memref<64x128xf32, #tpu.memory_space<vmem>>, vector<64x128xf32>
    %11 = arith.truncf %10 : vector<64x128xf32> to vector<64x128xbf16>
    %c0_8 = arith.constant 0 : index
    %c0_9 = arith.constant 0 : index
    %12 = vector.load %arg4[%c0_8, %c0_9] : memref<1x128xf32, #tpu.memory_space<vmem>>, vector<1x128xf32>
    %13 = arith.truncf %9 : vector<16x64xf32> to vector<16x64xbf16>
    %cst_10 = arith.constant dense<0.000000e+00> : vector<16x128xf32>
    %14 = tpu.matmul %13, %11, %cst_10 {dimension_numbers = #tpu.dot_dimension_numbers<[1], [0], [0], [1], [0, 0, 1, 1], [], []>} : vector<16x64xbf16>, vector<64x128xbf16>, vector<16x128xf32> -> vector<16x128xf32>
    %15 = vector.broadcast %12 : vector<1x128xf32> to vector<16x128xf32>
    %16 = arith.addf %14, %15 : vector<16x128xf32>
    %cst_11 = arith.constant 0.000000e+00 : f32
    %17 = vector.broadcast %cst_11 : f32 to vector<16x128xf32>
    %18 = arith.maximumf %16, %17 : vector<16x128xf32>
    %c0_12 = arith.constant 0 : index
    %c0_13 = arith.constant 0 : index
    %19 = vector.load %arg5[%c0_12, %c0_13] : memref<128x128xf32, #tpu.memory_space<vmem>>, vector<128x128xf32>
    %20 = arith.truncf %19 : vector<128x128xf32> to vector<128x128xbf16>
    %c0_14 = arith.constant 0 : index
    %c0_15 = arith.constant 0 : index
    %21 = vector.load %arg6[%c0_14, %c0_15] : memref<1x128xf32, #tpu.memory_space<vmem>>, vector<1x128xf32>
    %22 = vector.extract_strided_slice %18 {offsets = [0, 0], sizes = [1, 128], strides = [1, 1]} : vector<16x128xf32> to vector<1x128xf32>
    %23 = vector.extract_strided_slice %18 {offsets = [1, 0], sizes = [1, 128], strides = [1, 1]} : vector<16x128xf32> to vector<1x128xf32>
    %24 = arith.maximumf %22, %23 : vector<1x128xf32>
    %25 = vector.extract_strided_slice %18 {offsets = [2, 0], sizes = [1, 128], strides = [1, 1]} : vector<16x128xf32> to vector<1x128xf32>
    %26 = arith.maximumf %24, %25 : vector<1x128xf32>
    %27 = vector.extract_strided_slice %18 {offsets = [3, 0], sizes = [1, 128], strides = [1, 1]} : vector<16x128xf32> to vector<1x128xf32>
    %28 = arith.maximumf %26, %27 : vector<1x128xf32>
    %29 = vector.extract_strided_slice %18 {offsets = [4, 0], sizes = [1, 128], strides = [1, 1]} : vector<16x128xf32> to vector<1x128xf32>
    %30 = arith.maximumf %28, %29 : vector<1x128xf32>
    %31 = vector.extract_strided_slice %18 {offsets = [5, 0], sizes = [1, 128], strides = [1, 1]} : vector<16x128xf32> to vector<1x128xf32>
    %32 = arith.maximumf %30, %31 : vector<1x128xf32>
    %33 = vector.extract_strided_slice %18 {offsets = [6, 0], sizes = [1, 128], strides = [1, 1]} : vector<16x128xf32> to vector<1x128xf32>
    %34 = arith.maximumf %32, %33 : vector<1x128xf32>
    %35 = vector.extract_strided_slice %18 {offsets = [7, 0], sizes = [1, 128], strides = [1, 1]} : vector<16x128xf32> to vector<1x128xf32>
    %36 = arith.maximumf %34, %35 : vector<1x128xf32>
    %37 = arith.truncf %36 : vector<1x128xf32> to vector<1x128xbf16>
    %cst_16 = arith.constant dense<0.000000e+00> : vector<1x128xf32>
    %38 = tpu.matmul %37, %20, %cst_16 {dimension_numbers = #tpu.dot_dimension_numbers<[1], [0], [0], [1], [0, 0, 1, 1], [], []>} : vector<1x128xbf16>, vector<128x128xbf16>, vector<1x128xf32> -> vector<1x128xf32>
    %39 = arith.addf %38, %21 : vector<1x128xf32>
    %c0_17 = arith.constant 0 : index
    %c0_18 = arith.constant 0 : index
    %40 = vector.load %arg7[%c0_17, %c0_18] : memref<2x128xf32, #tpu.memory_space<vmem>>, vector<1x128xf32>
    tpu.vector_store %arg7[%c0_17, %c0_18], %39 {strides = array<i32>} : memref<2x128xf32, #tpu.memory_space<vmem>>, vector<1x128xf32>,
    %41 = vector.extract_strided_slice %18 {offsets = [8, 0], sizes = [1, 128], strides = [1, 1]} : vector<16x128xf32> to vector<1x128xf32>
    %42 = vector.extract_strided_slice %18 {offsets = [9, 0], sizes = [1, 128], strides = [1, 1]} : vector<16x128xf32> to vector<1x128xf32>
    %43 = arith.maximumf %41, %42 : vector<1x128xf32>
    %44 = vector.extract_strided_slice %18 {offsets = [10, 0], sizes = [1, 128], strides = [1, 1]} : vector<16x128xf32> to vector<1x128xf32>
    %45 = arith.maximumf %43, %44 : vector<1x128xf32>
    %46 = vector.extract_strided_slice %18 {offsets = [11, 0], sizes = [1, 128], strides = [1, 1]} : vector<16x128xf32> to vector<1x128xf32>
    %47 = arith.maximumf %45, %46 : vector<1x128xf32>
    %48 = vector.extract_strided_slice %18 {offsets = [12, 0], sizes = [1, 128], strides = [1, 1]} : vector<16x128xf32> to vector<1x128xf32>
    %49 = arith.maximumf %47, %48 : vector<1x128xf32>
    %50 = vector.extract_strided_slice %18 {offsets = [13, 0], sizes = [1, 128], strides = [1, 1]} : vector<16x128xf32> to vector<1x128xf32>
    %51 = arith.maximumf %49, %50 : vector<1x128xf32>
    %52 = vector.extract_strided_slice %18 {offsets = [14, 0], sizes = [1, 128], strides = [1, 1]} : vector<16x128xf32> to vector<1x128xf32>
    %53 = arith.maximumf %51, %52 : vector<1x128xf32>
    %54 = vector.extract_strided_slice %18 {offsets = [15, 0], sizes = [1, 128], strides = [1, 1]} : vector<16x128xf32> to vector<1x128xf32>
    %55 = arith.maximumf %53, %54 : vector<1x128xf32>
    %56 = arith.truncf %55 : vector<1x128xf32> to vector<1x128xbf16>
    %cst_19 = arith.constant dense<0.000000e+00> : vector<1x128xf32>
    %57 = tpu.matmul %56, %20, %cst_19 {dimension_numbers = #tpu.dot_dimension_numbers<[1], [0], [0], [1], [0, 0, 1, 1], [], []>} : vector<1x128xbf16>, vector<128x128xbf16>, vector<1x128xf32> -> vector<1x128xf32>
    %58 = arith.addf %57, %21 : vector<1x128xf32>
    %c1 = arith.constant 1 : index
    %c0_20 = arith.constant 0 : index
    %59 = vector.load %arg7[%c1, %c0_20] : memref<2x128xf32, #tpu.memory_space<vmem>>, vector<1x128xf32>
    tpu.vector_store %arg7[%c1, %c0_20], %58 {strides = array<i32>} : memref<2x128xf32, #tpu.memory_space<vmem>>, vector<1x128xf32>,
    return
  }
}

</mosaic_0001>

<llo_original>
// kernel: pointnetpp_forward.3
$region0: #{pointnetpp_forward.3}
  #allocation0 [shape = 'u32[]', space=smem, size = 0x4, offset = 0x4, fixed_abs, tag = 'smem constant byte address 0x4 - core index']
  #allocation1 [shape = 'u32[72,128]{1,0:T(1,128)}', space=vmem, size = 0x9000, scoped, tag = 'internal scratch']
  %s0 = inlined_call_operand.vmem [shape: f32[256,6], index: 0, kind: input, shape index: {}]
  %s1 = inlined_call_operand.vmem [shape: f32[6,32], index: 1, kind: input, shape index: {}]
  %s2 = inlined_call_operand.vmem [shape: f32[1,32], index: 2, kind: input, shape index: {}]
  %s3 = inlined_call_operand.vmem [shape: f32[32,32], index: 3, kind: input, shape index: {}]
  %s4 = inlined_call_operand.vmem [shape: f32[1,32], index: 4, kind: input, shape index: {}]
  %s5 = inlined_call_operand.vmem [shape: f32[32,32], index: 5, kind: output, shape index: {}]
  %s6 = sld [smem:[#allocation0]]
  $region30: #{pointnetpp_forward.3} parent=0
    _
  %s8 = ssub.s32 1, %s6
  %s9 = scalar_select 0, %s8, %s6
  // Predicated region
  $region2: #{pointnetpp_forward.3} parent=0 // pred_check
    _
  $region3: #{pointnetpp_forward.3} parent=0 // pred_check_branch
    %11 = sbr.rel (0) target = $region5
  $region4: #{pointnetpp_forward.3} parent=0 // pred_region
    _
  $region5: #{pointnetpp_forward.3} parent=0 // pred_fallthru
    _
  // Predicated region
  $region6: #{pointnetpp_forward.3} parent=0 // pred_check
    _
  $region7: #{pointnetpp_forward.3} parent=0 // pred_check_branch
    %13 = sbr.rel (0) target = $region9
  $region8: #{pointnetpp_forward.3} parent=0 // pred_region
    _
  $region9: #{pointnetpp_forward.3} parent=0 // pred_fallthru
    _
  // Predicated region
  $region10: #{pointnetpp_forward.3} parent=0 // pred_check
    _
  $region11: #{pointnetpp_forward.3} parent=0 // pred_check_branch
    %15 = sbr.rel (0) target = $region13
  $region12: #{pointnetpp_forward.3} parent=0 // pred_region
    _
  $region13: #{pointnetpp_forward.3} parent=0 // pred_fallthru
    _
  // Predicated region
  $region14: #{pointnetpp_forward.3} parent=0 // pred_check
    _
  $region15: #{pointnetpp_forward.3} parent=0 // pred_check_branch
    %17 = sbr.rel (0) target = $region17
  $region16: #{pointnetpp_forward.3} parent=0 // pred_region
    _
  $region17: #{pointnetpp_forward.3} parent=0 // pred_fallthru
    _
  // Predicated region
  $region18: #{pointnetpp_forward.3} parent=0 // pred_check
    _
  $region19: #{pointnetpp_forward.3} parent=0 // pred_check_branch
    %19 = sbr.rel (0) target = $region21
  $region20: #{pointnetpp_forward.3} parent=0 // pred_region
    _
  $region21: #{pointnetpp_forward.3} parent=0 // pred_fallthru
    _
  %v21 = vld [vmem:[%s0] sm:$0xff]
  %v22 = vld [vmem:[%s0 + $0x8] sm:$0xff]
  %v23 = vld [vmem:[%s0 + $0x10] sm:$0xff]
  %v24 = vld [vmem:[%s0 + $0x18] sm:$0xff]
  %v25 = vld [vmem:[%s0 + $0x20] sm:$0xff]
  %v26 = vld [vmem:[%s0 + $0x28] sm:$0xff]
  %v27 = vld [vmem:[%s0 + $0x30] sm:$0xff]
  %v28 = vld [vmem:[%s0 + $0x38] sm:$0xff]
  %v29 = vld [vmem:[%s0 + $0x40] sm:$0xff]
  %v30 = vld [vmem:[%s0 + $0x48] sm:$0xff]
  %v31 = vld [vmem:[%s0 + $0x50] sm:$0xff]
  %v32 = vld [vmem:[%s0 + $0x58] sm:$0xff]
  %v33 = vld [vmem:[%s0 + $0x60] sm:$0xff]
  %v34 = vld [vmem:[%s0 + $0x68] sm:$0xff]
  %v35 = vld [vmem:[%s0 + $0x70] sm:$0xff]
  %v36 = vld [vmem:[%s0 + $0x78] sm:$0xff]
  %v37 = vld [vmem:[%s0 + $0x80] sm:$0xff]
  %v38 = vld [vmem:[%s0 + $0x88] sm:$0xff]
  %v39 = vld [vmem:[%s0 + $0x90] sm:$0xff]
  %v40 = vld [vmem:[%s0 + $0x98] sm:$0xff]
  %v41 = vld [vmem:[%s0 + $0xa0] sm:$0xff]
  %v42 = vld [vmem:[%s0 + $0xa8] sm:$0xff]
  %v43 = vld [vmem:[%s0 + $0xb0] sm:$0xff]
  %v44 = vld [vmem:[%s0 + $0xb8] sm:$0xff]
  %v45 = vld [vmem:[%s0 + $0xc0] sm:$0xff]
  %v46 = vld [vmem:[%s0 + $0xc8] sm:$0xff]
  %v47 = vld [vmem:[%s0 + $0xd0] sm:$0xff]
  %v48 = vld [vmem:[%s0 + $0xd8] sm:$0xff]
  %v49 = vld [vmem:[%s0 + $0xe0] sm:$0xff]
  %v50 = vld [vmem:[%s0 + $0xe8] sm:$0xff]
  %v51 = vld [vmem:[%s0 + $0xf0] sm:$0xff]
  %v52 = vld [vmem:[%s0 + $0xf8] sm:$0xff]
  %v53 = vld [vmem:[%s1] sm:$0x3f]
  %v54 = vpack.c.bf16 %v53, %v53
  %v55 = vld [vmem:[%s2] sm:$0x1]
  %v56 = vpack.c.bf16 %v22, %v21
  %v57 = vpack.c.bf16 %v24, %v23
  %v58 = vpack.c.bf16 %v26, %v25
  %v59 = vpack.c.bf16 %v28, %v27
  %v60 = vpack.c.bf16 %v30, %v29
  %v61 = vpack.c.bf16 %v32, %v31
  %v62 = vpack.c.bf16 %v34, %v33
  %v63 = vpack.c.bf16 %v36, %v35
  %v64 = vpack.c.bf16 %v38, %v37
  %v65 = vpack.c.bf16 %v40, %v39
  %v66 = vpack.c.bf16 %v42, %v41
  %v67 = vpack.c.bf16 %v44, %v43
  %v68 = vpack.c.bf16 %v46, %v45
  %v69 = vpack.c.bf16 %v48, %v47
  %v70 = vpack.c.bf16 %v50, %v49
  %v71 = vpack.c.bf16 %v52, %v51
  %v73 = vperm.slane %v55, 0
  %vm75 = vcmask 48128
  %v77 = vsel %vm75, %v56, 0
  %v80 = vsel %vm75, %v57, 0
  %v83 = vsel %vm75, %v58, 0
  %v86 = vsel %vm75, %v59, 0
  %v89 = vsel %vm75, %v60, 0
  %v92 = vsel %vm75, %v61, 0
  %v95 = vsel %vm75, %v62, 0
  %v98 = vsel %vm75, %v63, 0
  %v101 = vsel %vm75, %v64, 0
  %v104 = vsel %vm75, %v65, 0
  %v107 = vsel %vm75, %v66, 0
  %v110 = vsel %vm75, %v67, 0
  %v113 = vsel %vm75, %v68, 0
  %v116 = vsel %vm75, %v69, 0
  %v119 = vsel %vm75, %v70, 0
  %v122 = vsel %vm75, %v71, 0
  %vm124 = vcmask 1042432
  %v126 = vsel %vm124, %v54, 0
  %128 = vmatpush.bf16.msra.mxu0 0
  %129 = vmatpush.bf16.msra.mxu0 0
  %130 = vmatpush.bf16.msra.mxu0 0
  %131 = vmatpush.bf16.msra.mxu0 0
  %132 = vmatpush.bf16.msra.mxu0 0
  %133 = vmatpush.bf16.msra.mxu0 0
  %134 = vmatpush.bf16.msra.mxu0 0
  %135 = vmatpush.bf16.msra.mxu0 %v126
  %136 = vmatmul.bf16.gmra.mxu0 %v77
  %v137 = vpop.f32.mrf.mxu0
  %v138 = vadd.f32 %v73, %v137
  %v139 = vpop.f32.mrf.mxu0
  %v140 = vadd.f32 %v73, %v139
  %141 = vmatmul.bf16.gmra.mxu0 %v80
  %v142 = vpop.f32.mrf.mxu0
  %v143 = vadd.f32 %v73, %v142
  %v144 = vpop.f32.mrf.mxu0
  %v145 = vadd.f32 %v73, %v144
  %146 = vmatmul.bf16.gmra.mxu0 %v83
  %v147 = vpop.f32.mrf.mxu0
  %v148 = vadd.f32 %v73, %v147
  %v149 = vpop.f32.mrf.mxu0
  %v150 = vadd.f32 %v73, %v149
  %151 = vmatmul.bf16.gmra.mxu0 %v86
  %v152 = vpop.f32.mrf.mxu0
  %v153 = vadd.f32 %v73, %v152
  %v154 = vpop.f32.mrf.mxu0
  %v155 = vadd.f32 %v73, %v154
  %156 = vmatmul.bf16.gmra.mxu0 %v89
  %v157 = vpop.f32.mrf.mxu0
  %v158 = vadd.f32 %v73, %v157
  %v159 = vpop.f32.mrf.mxu0
  %v160 = vadd.f32 %v73, %v159
  %161 = vmatmul.bf16.gmra.mxu0 %v92
  %v162 = vpop.f32.mrf.mxu0
  %v163 = vadd.f32 %v73, %v162
  %v164 = vpop.f32.mrf.mxu0
  %v165 = vadd.f32 %v73, %v164
  %166 = vmatmul.bf16.gmra.mxu0 %v95
  %v167 = vpop.f32.mrf.mxu0
  %v168 = vadd.f32 %v73, %v167
  %v169 = vpop.f32.mrf.mxu0
  %v170 = vadd.f32 %v73, %v169
  %171 = vmatmul.bf16.gmra.mxu0 %v98
  %v172 = vpop.f32.mrf.mxu0
  %v173 = vadd.f32 %v73, %v172
  %v174 = vpop.f32.mrf.mxu0
  %v175 = vadd.f32 %v73, %v174
  %176 = vmatmul.bf16.gmra.mxu0 %v101
  %v177 = vpop.f32.mrf.mxu0
  %v178 = vadd.f32 %v73, %v177
  %v179 = vpop.f32.mrf.mxu0
  %v180 = vadd.f32 %v73, %v179
  %181 = vmatmul.bf16.gmra.mxu0 %v104
  %v182 = vpop.f32.mrf.mxu0
  %v183 = vadd.f32 %v73, %v182
  %v184 = vpop.f32.mrf.mxu0
  %v185 = vadd.f32 %v73, %v184
  %186 = vmatmul.bf16.gmra.mxu0 %v107
  %v187 = vpop.f32.mrf.mxu0
  %v188 = vadd.f32 %v73, %v187
  %v189 = vpop.f32.mrf.mxu0
  %v190 = vadd.f32 %v73, %v189
  %191 = vmatmul.bf16.gmra.mxu0 %v110
  %v192 = vpop.f32.mrf.mxu0
  %v193 = vadd.f32 %v73, %v192
  %v194 = vpop.f32.mrf.mxu0
  %v195 = vadd.f32 %v73, %v194
  %196 = vmatmul.bf16.gmra.mxu0 %v113
  %v197 = vpop.f32.mrf.mxu0
  %v198 = vadd.f32 %v73, %v197
  %v199 = vpop.f32.mrf.mxu0
  %v200 = vadd.f32 %v73, %v199
  %201 = vmatmul.bf16.gmra.mxu0 %v116
  %v202 = vpop.f32.mrf.mxu0
  %v203 = vadd.f32 %v73, %v202
  %v204 = vpop.f32.mrf.mxu0
  %v205 = vadd.f32 %v73, %v204
  %206 = vmatmul.bf16.gmra.mxu0 %v119
  %v207 = vpop.f32.mrf.mxu0
  %v208 = vadd.f32 %v73, %v207
  %v209 = vpop.f32.mrf.mxu0
  %v210 = vadd.f32 %v73, %v209
  %211 = vmatmul.bf16.gmra.mxu0 %v122
  %v212 = vpop.f32.mrf.mxu0
  %v213 = vadd.f32 %v73, %v212
  %v214 = vpop.f32.mrf.mxu0
  %v215 = vadd.f32 %v73, %v214
  %216 = vdwg.mxu0
  %v217 = vmax.f32 %v138, 0.0
  %v218 = vmax.f32 %v140, 0.0
  %v219 = vmax.f32 %v143, 0.0
  %v220 = vmax.f32 %v145, 0.0
  %v221 = vmax.f32 %v148, 0.0
  %v222 = vmax.f32 %v150, 0.0
  %v223 = vmax.f32 %v153, 0.0
  %v224 = vmax.f32 %v155, 0.0
  %v225 = vmax.f32 %v158, 0.0
  %v226 = vmax.f32 %v160, 0.0
  %v227 = vmax.f32 %v163, 0.0
  %v228 = vmax.f32 %v165, 0.0
  %v229 = vmax.f32 %v168, 0.0
  %v230 = vmax.f32 %v170, 0.0
  %v231 = vmax.f32 %v173, 0.0
  %v232 = vmax.f32 %v175, 0.0
  %v233 = vmax.f32 %v178, 0.0
  %v234 = vmax.f32 %v180, 0.0
  %v235 = vmax.f32 %v183, 0.0
  %v236 = vmax.f32 %v185, 0.0
  %v237 = vmax.f32 %v188, 0.0
  %v238 = vmax.f32 %v190, 0.0
  %v239 = vmax.f32 %v193, 0.0
  %v240 = vmax.f32 %v195, 0.0
  %v241 = vmax.f32 %v198, 0.0
  %v242 = vmax.f32 %v200, 0.0
  %v243 = vmax.f32 %v203, 0.0
  %v244 = vmax.f32 %v205, 0.0
  %v245 = vmax.f32 %v208, 0.0
  %v246 = vmax.f32 %v210, 0.0
  %v247 = vmax.f32 %v213, 0.0
  %v248 = vmax.f32 %v215, 0.0
  %v249 = vld [vmem:[%s3] sm:$0xff]
  %v250 = vld [vmem:[%s3 + $0x8] sm:$0xff]
  %v251 = vld [vmem:[%s3 + $0x10] sm:$0xff]
  %v252 = vld [vmem:[%s3 + $0x18] sm:$0xff]
  %v253 = vpack.c.bf16 %v250, %v249
  %v254 = vpack.c.bf16 %v252, %v251
  %v255 = vld [vmem:[%s4] sm:$0x1]
  %v256 = vpack.c.bf16 %v218, %v217
  %v257 = vpack.c.bf16 %v220, %v219
  %v258 = vpack.c.bf16 %v222, %v221
  %v259 = vpack.c.bf16 %v224, %v223
  %v260 = vpack.c.bf16 %v226, %v225
  %v261 = vpack.c.bf16 %v228, %v227
  %v262 = vpack.c.bf16 %v230, %v229
  %v263 = vpack.c.bf16 %v232, %v231
  %v264 = vpack.c.bf16 %v234, %v233
  %v265 = vpack.c.bf16 %v236, %v235
  %v266 = vpack.c.bf16 %v238, %v237
  %v267 = vpack.c.bf16 %v240, %v239
  %v268 = vpack.c.bf16 %v242, %v241
  %v269 = vpack.c.bf16 %v244, %v243
  %v270 = vpack.c.bf16 %v246, %v245
  %v271 = vpack.c.bf16 %v248, %v247
  %v273 = vperm.slane %v255, 0
  %vm275 = vcmask 261120
  %v277 = vsel %vm275, %v256, 0
  %v280 = vsel %vm275, %v257, 0
  %v283 = vsel %vm275, %v258, 0
  %v286 = vsel %vm275, %v259, 0
  %v289 = vsel %vm275, %v260, 0
  %v292 = vsel %vm275, %v261, 0
  %v295 = vsel %vm275, %v262, 0
  %v298 = vsel %vm275, %v263, 0
  %v301 = vsel %vm275, %v264, 0
  %v304 = vsel %vm275, %v265, 0
  %v307 = vsel %vm275, %v266, 0
  %v310 = vsel %vm275, %v267, 0
  %v313 = vsel %vm275, %v268, 0
  %v316 = vsel %vm275, %v269, 0
  %v319 = vsel %vm275, %v270, 0
  %v322 = vsel %vm275, %v271, 0
  %324 = vmatpush.bf16.msra.mxu0 0
  %325 = vmatpush.bf16.msra.mxu0 0
  %326 = vmatpush.bf16.msra.mxu0 0
  %327 = vmatpush.bf16.msra.mxu0 0
  %328 = vmatpush.bf16.msra.mxu0 0
  %329 = vmatpush.bf16.msra.mxu0 0
  %330 = vmatpush.bf16.msra.mxu0 %v254
  %331 = vmatpush.bf16.msra.mxu0 %v253
  %332 = vmatmul.bf16.gmra.mxu0 %v277
  %v333 = vpop.f32.mrf.mxu0
  %v334 = vadd.f32 %v273, %v333
  %v335 = vpop.f32.mrf.mxu0
  %v336 = vadd.f32 %v273, %v335
  %337 = vmatmul.bf16.gmra.mxu0 %v280
  %v338 = vpop.f32.mrf.mxu0
  %v339 = vadd.f32 %v273, %v338
  %v340 = vpop.f32.mrf.mxu0
  %v341 = vadd.f32 %v273, %v340
  %342 = vmatmul.bf16.gmra.mxu0 %v283
  %v343 = vpop.f32.mrf.mxu0
  %v344 = vadd.f32 %v273, %v343
  %v345 = vpop.f32.mrf.mxu0
  %v346 = vadd.f32 %v273, %v345
  %347 = vmatmul.bf16.gmra.mxu0 %v286
  %v348 = vpop.f32.mrf.mxu0
  %v349 = vadd.f32 %v273, %v348
  %v350 = vpop.f32.mrf.mxu0
  %v351 = vadd.f32 %v273, %v350
  %352 = vmatmul.bf16.gmra.mxu0 %v289
  %v353 = vpop.f32.mrf.mxu0
  %v354 = vadd.f32 %v273, %v353
  %v355 = vpop.f32.mrf.mxu0
  %v356 = vadd.f32 %v273, %v355
  %357 = vmatmul.bf16.gmra.mxu0 %v292
  %v358 = vpop.f32.mrf.mxu0
  %v359 = vadd.f32 %v273, %v358
  %v360 = vpop.f32.mrf.mxu0
  %v361 = vadd.f32 %v273, %v360
  %362 = vmatmul.bf16.gmra.mxu0 %v295
  %v363 = vpop.f32.mrf.mxu0
  %v364 = vadd.f32 %v273, %v363
  %v365 = vpop.f32.mrf.mxu0
  %v366 = vadd.f32 %v273, %v365
  %367 = vmatmul.bf16.gmra.mxu0 %v298
  %v368 = vpop.f32.mrf.mxu0
  %v369 = vadd.f32 %v273, %v368
  %v370 = vpop.f32.mrf.mxu0
  %v371 = vadd.f32 %v273, %v370
  %372 = vmatmul.bf16.gmra.mxu0 %v301
  %v373 = vpop.f32.mrf.mxu0
  %v374 = vadd.f32 %v273, %v373
  %v375 = vpop.f32.mrf.mxu0
  %v376 = vadd.f32 %v273, %v375
  %377 = vmatmul.bf16.gmra.mxu0 %v304
  %v378 = vpop.f32.mrf.mxu0
  %v379 = vadd.f32 %v273, %v378
  %v380 = vpop.f32.mrf.mxu0
  %v381 = vadd.f32 %v273, %v380
  %382 = vmatmul.bf16.gmra.mxu0 %v307
  %v383 = vpop.f32.mrf.mxu0
  %v384 = vadd.f32 %v273, %v383
  %v385 = vpop.f32.mrf.mxu0
  %v386 = vadd.f32 %v273, %v385
  %387 = vmatmul.bf16.gmra.mxu0 %v310
  %v388 = vpop.f32.mrf.mxu0
  %v389 = vadd.f32 %v273, %v388
  %v390 = vpop.f32.mrf.mxu0
  %v391 = vadd.f32 %v273, %v390
  %392 = vmatmul.bf16.gmra.mxu0 %v313
  %v393 = vpop.f32.mrf.mxu0
  %v394 = vadd.f32 %v273, %v393
  %v395 = vpop.f32.mrf.mxu0
  %v396 = vadd.f32 %v273, %v395
  %397 = vmatmul.bf16.gmra.mxu0 %v316
  %v398 = vpop.f32.mrf.mxu0
  %v399 = vadd.f32 %v273, %v398
  %v400 = vpop.f32.mrf.mxu0
  %v401 = vadd.f32 %v273, %v400
  %402 = vmatmul.bf16.gmra.mxu0 %v319
  %v403 = vpop.f32.mrf.mxu0
  %v404 = vadd.f32 %v273, %v403
  %v405 = vpop.f32.mrf.mxu0
  %v406 = vadd.f32 %v273, %v405
  %407 = vmatmul.bf16.gmra.mxu0 %v322
  %v408 = vpop.f32.mrf.mxu0
  %v409 = vadd.f32 %v273, %v408
  %v410 = vpop.f32.mrf.mxu0
  %v411 = vadd.f32 %v273, %v410
  %412 = vdwg.mxu0
  %v413 = vmax.f32 %v334, 0.0
  %v414 = vmax.f32 %v336, 0.0
  %v415 = vmax.f32 %v339, 0.0
  %v416 = vmax.f32 %v341, 0.0
  %v417 = vmax.f32 %v344, 0.0
  %v418 = vmax.f32 %v346, 0.0
  %v419 = vmax.f32 %v349, 0.0
  %v420 = vmax.f32 %v351, 0.0
  %v421 = vmax.f32 %v354, 0.0
  %v422 = vmax.f32 %v356, 0.0
  %v423 = vmax.f32 %v359, 0.0
  %v424 = vmax.f32 %v361, 0.0
  %v425 = vmax.f32 %v364, 0.0
  %v426 = vmax.f32 %v366, 0.0
  %v427 = vmax.f32 %v369, 0.0
  %v428 = vmax.f32 %v371, 0.0
  %v429 = vmax.f32 %v374, 0.0
  %v430 = vmax.f32 %v376, 0.0
  %v431 = vmax.f32 %v379, 0.0
  %v432 = vmax.f32 %v381, 0.0
  %v433 = vmax.f32 %v384, 0.0
  %v434 = vmax.f32 %v386, 0.0
  %v435 = vmax.f32 %v389, 0.0
  %v436 = vmax.f32 %v391, 0.0
  %v437 = vmax.f32 %v394, 0.0
  %v438 = vmax.f32 %v396, 0.0
  %v439 = vmax.f32 %v399, 0.0
  %v440 = vmax.f32 %v401, 0.0
  %v441 = vmax.f32 %v404, 0.0
  %v442 = vmax.f32 %v406, 0.0
  %v443 = vmax.f32 %v409, 0.0
  %v444 = vmax.f32 %v411, 0.0
  %v445 = vmax.f32 %v413, %v415
  %v446 = vmax.f32 %v414, %v416
  %v447 = vmax.f32 %v445, %v417
  %v448 = vmax.f32 %v446, %v418
  %v449 = vmax.f32 %v447, %v419
  %v450 = vmax.f32 %v448, %v420
  %v451 = vmax.f32 %v449, %v421
  %v452 = vmax.f32 %v450, %v422
  %v453 = vmax.f32 %v451, %v423
  %v454 = vmax.f32 %v452, %v424
  %v455 = vmax.f32 %v453, %v425
  %v456 = vmax.f32 %v454, %v426
  %v457 = vmax.f32 %v455, %v427
  %v458 = vmax.f32 %v456, %v428
  %459 = vst.msk [vmem:[%s5] sm:$0xff] %vm275, %v457
  %460 = vst.msk [vmem:[%s5 + $0x8] sm:$0xff] %vm275, %v458
  %v461 = vmax.f32 %v429, %v431
  %v462 = vmax.f32 %v430, %v432
  %v463 = vmax.f32 %v461, %v433
  %v464 = vmax.f32 %v462, %v434
  %v465 = vmax.f32 %v463, %v435
  %v466 = vmax.f32 %v464, %v436
  %v467 = vmax.f32 %v465, %v437
  %v468 = vmax.f32 %v466, %v438
  %v469 = vmax.f32 %v467, %v439
  %v470 = vmax.f32 %v468, %v440
  %v471 = vmax.f32 %v469, %v441
  %v472 = vmax.f32 %v470, %v442
  %v473 = vmax.f32 %v471, %v443
  %v474 = vmax.f32 %v472, %v444
  %475 = vst.msk [vmem:[%s5 + $0x10] sm:$0xff] %vm275, %v473
  %476 = vst.msk [vmem:[%s5 + $0x18] sm:$0xff] %vm275, %v474
  // Predicated region
  $region22: #{pointnetpp_forward.3} parent=0 // pred_check
    _
  $region23: #{pointnetpp_forward.3} parent=0 // pred_check_branch
    %478 = sbr.rel (0) target = $region25
  $region24: #{pointnetpp_forward.3} parent=0 // pred_region
    _
  $region25: #{pointnetpp_forward.3} parent=0 // pred_fallthru
    _
  // Predicated region
  $region26: #{pointnetpp_forward.3} parent=0 // pred_check
    _
  $region27: #{pointnetpp_forward.3} parent=0 // pred_check_branch
    %480 = sbr.rel (0) target = $region29
  $region28: #{pointnetpp_forward.3} parent=0 // pred_region
    _
  $region29: #{pointnetpp_forward.3} parent=0 // pred_fallthru
    _

// kernel: pointnetpp_forward.5
$region0: #{pointnetpp_forward.5}
  #allocation0 [shape = 'u32[]', space=smem, size = 0x4, offset = 0x4, fixed_abs, tag = 'smem constant byte address 0x4 - core index']
  #allocation1 [shape = 'u32[72,128]{1,0:T(1,128)}', space=vmem, size = 0x9000, scoped, tag = 'internal scratch']
  %s0 = inlined_call_operand.vmem [shape: f32[16,67], index: 0, kind: input, shape index: {}]
  %s1 = inlined_call_operand.vmem [shape: f32[67,64], index: 1, kind: input, shape index: {}]
  %s2 = inlined_call_operand.vmem [shape: f32[1,64], index: 2, kind: input, shape index: {}]
  %s3 = inlined_call_operand.vmem [shape: f32[64,128], index: 3, kind: input, shape index: {}]
  %s4 = inlined_call_operand.vmem [shape: f32[1,128], index: 4, kind: input, shape index: {}]
  %s5 = inlined_call_operand.vmem [shape: f32[128,128], index: 5, kind: input, shape index: {}]
  %s6 = inlined_call_operand.vmem [shape: f32[1,128], index: 6, kind: input, shape index: {}]
  %s7 = inlined_call_operand.hbm [shape: f32[2,128], index: 7, kind: output, shape index: {}]
  %s8 = sld [smem:[#allocation0]]
  $region38: #{pointnetpp_forward.5} parent=0
    _
  %s10 = ssub.s32 1, %s8
  %s11 = scalar_select 0, %s10, %s8
  $region1: #{pointnetpp_forward.5} parent=0
    #allocation2 [shape = 'u8[1024]{0}', space=vmem, size = 0x400, scoped, tag = 'output window, operand 0, single buffered']
    #allocation3 [shape = 's32[1]{0}', space=sflag, size = 0x4, scoped, tag = 'scoped memory for pointnetpp_forward.5']
    %12 = vsyncpa [#allocation3], 0
    // Predicated region
    $region2: #{pointnetpp_forward.5} parent=1 // pred_check
      _
    $region3: #{pointnetpp_forward.5} parent=1 // pred_check_branch
      %14 = sbr.rel (0) target = $region5
    $region4: #{pointnetpp_forward.5} parent=1 // pred_region
      _
    $region5: #{pointnetpp_forward.5} parent=1 // pred_fallthru
      _
    // Predicated region
    $region6: #{pointnetpp_forward.5} parent=1 // pred_check
      _
    $region7: #{pointnetpp_forward.5} parent=1 // pred_check_branch
      %16 = sbr.rel (0) target = $region9
    $region8: #{pointnetpp_forward.5} parent=1 // pred_region
      _
    $region9: #{pointnetpp_forward.5} parent=1 // pred_fallthru
      _
    // Predicated region
    $region10: #{pointnetpp_forward.5} parent=1 // pred_check
      _
    $region11: #{pointnetpp_forward.5} parent=1 // pred_check_branch
      %18 = sbr.rel (0) target = $region13
    $region12: #{pointnetpp_forward.5} parent=1 // pred_region
      _
    $region13: #{pointnetpp_forward.5} parent=1 // pred_fallthru
      _
    // Predicated region
    $region14: #{pointnetpp_forward.5} parent=1 // pred_check
      _
    $region15: #{pointnetpp_forward.5} parent=1 // pred_check_branch
      %20 = sbr.rel (0) target = $region17
    $region16: #{pointnetpp_forward.5} parent=1 // pred_region
      _
    $region17: #{pointnetpp_forward.5} parent=1 // pred_fallthru
      _
    // Predicated region
    $region18: #{pointnetpp_forward.5} parent=1 // pred_check
      _
    $region19: #{pointnetpp_forward.5} parent=1 // pred_check_branch
      %22 = sbr.rel (0) target = $region21
    $region20: #{pointnetpp_forward.5} parent=1 // pred_region
      _
    $region21: #{pointnetpp_forward.5} parent=1 // pred_fallthru
      _
    // Predicated region
    $region22: #{pointnetpp_forward.5} parent=1 // pred_check
      _
    $region23: #{pointnetpp_forward.5} parent=1 // pred_check_branch
      %24 = sbr.rel (0) target = $region25
    $region24: #{pointnetpp_forward.5} parent=1 // pred_region
      _
    $region25: #{pointnetpp_forward.5} parent=1 // pred_fallthru
      _
    // Predicated region
    $region26: #{pointnetpp_forward.5} parent=1 // pred_check
      _
    $region27: #{pointnetpp_forward.5} parent=1 // pred_check_branch
      %26 = sbr.rel (0) target = $region29
    $region28: #{pointnetpp_forward.5} parent=1 // pred_region
      _
    $region29: #{pointnetpp_forward.5} parent=1 // pred_fallthru
      _
    %v28 = vld [vmem:[%s0] sm:$0xff]
    %v29 = vld [vmem:[%s0 + $0x8] sm:$0xff]
    %v30 = vld [vmem:[%s1] sm:$0xff]
    %v31 = vld [vmem:[%s1 + $0x8] sm:$0xff]
    %v32 = vld [vmem:[%s1 + $0x10] sm:$0xff]
    %v33 = vld [vmem:[%s1 + $0x18] sm:$0xff]
    %v34 = vld [vmem:[%s1 + $0x20] sm:$0xff]
    %v35 = vld [vmem:[%s1 + $0x28] sm:$0xff]
    %v36 = vld [vmem:[%s1 + $0x30] sm:$0xff]
    %v37 = vld [vmem:[%s1 + $0x38] sm:$0xff]
    %v38 = vld [vmem:[%s1 + $0x40] sm:$0x7]
    %v39 = vpack.c.bf16 %v31, %v30
    %v40 = vpack.c.bf16 %v33, %v32
    %v41 = vpack.c.bf16 %v35, %v34
    %v42 = vpack.c.bf16 %v37, %v36
    %v43 = vpack.c.bf16 %v38, %v38
    %v44 = vld [vmem:[%s2] sm:$0x1]
    %v45 = vpack.c.bf16 %v29, %v28
    %v47 = vperm.slane %v44, 0
    %vm49 = vcmask 547840
    %v51 = vsel %vm49, %v45, 0
    %vm53 = vcmask 1040384
    %vm54 = vcmask 1041408
    %v55 = vsel %vm53, 4294967295, 65535
    %v56 = vsel %vm54, %v55, 0
    %v58 = vand.u32 %v43, %v56
    %60 = vmatpush.bf16.msra.mxu0 0
    %61 = vmatpush.bf16.msra.mxu0 0
    %62 = vmatpush.bf16.msra.mxu0 0
    %63 = vmatpush.bf16.msra.mxu0 %v58
    %64 = vmatpush.bf16.msra.mxu0 %v42
    %65 = vmatpush.bf16.msra.mxu0 %v41
    %66 = vmatpush.bf16.msra.mxu0 %v40
    %67 = vmatpush.bf16.msra.mxu0 %v39
    %68 = vmatmul.bf16.gmra.mxu0 %v51
    %v69 = vpop.f32.mrf.mxu0
    %v70 = vadd.f32 %v47, %v69
    %v71 = vpop.f32.mrf.mxu0
    %v72 = vadd.f32 %v47, %v71
    %73 = vdwg.mxu0
    %v74 = vmax.f32 %v70, 0.0
    %v75 = vmax.f32 %v72, 0.0
    %v76 = vld [vmem:[%s3] sm:$0xff]
    %v77 = vld [vmem:[%s3 + $0x8] sm:$0xff]
    %v78 = vld [vmem:[%s3 + $0x10] sm:$0xff]
    %v79 = vld [vmem:[%s3 + $0x18] sm:$0xff]
    %v80 = vld [vmem:[%s3 + $0x20] sm:$0xff]
    %v81 = vld [vmem:[%s3 + $0x28] sm:$0xff]
    %v82 = vld [vmem:[%s3 + $0x30] sm:$0xff]
    %v83 = vld [vmem:[%s3 + $0x38] sm:$0xff]
    %v84 = vpack.c.bf16 %v77, %v76
    %v85 = vpack.c.bf16 %v79, %v78
    %v86 = vpack.c.bf16 %v81, %v80
    %v87 = vpack.c.bf16 %v83, %v82
    %v88 = vld [vmem:[%s4] sm:$0x1]
    %v89 = vpack.c.bf16 %v75, %v74
    %v91 = vperm.slane %v88, 0
    %vm93 = vcmask 523264
    %v95 = vsel %vm93, %v89, 0
    %97 = vmatpush.bf16.msra.mxu0 0
    %98 = vmatpush.bf16.msra.mxu0 0
    %99 = vmatpush.bf16.msra.mxu0 0
    %100 = vmatpush.bf16.msra.mxu0 0
    %101 = vmatpush.bf16.msra.mxu0 %v87
    %102 = vmatpush.bf16.msra.mxu0 %v86
    %103 = vmatpush.bf16.msra.mxu0 %v85
    %104 = vmatpush.bf16.msra.mxu0 %v84
    %105 = vmatmul.bf16.gmra.mxu0 %v95
    %v106 = vpop.f32.mrf.mxu0
    %v107 = vadd.f32 %v91, %v106
    %v108 = vpop.f32.mrf.mxu0
    %v109 = vadd.f32 %v91, %v108
    %110 = vdwg.mxu0
    %v111 = vmax.f32 %v107, 0.0
    %v112 = vmax.f32 %v109, 0.0
    %v113 = vld [vmem:[%s5] sm:$0xff]
    %v114 = vld [vmem:[%s5 + $0x8] sm:$0xff]
    %v115 = vld [vmem:[%s5 + $0x10] sm:$0xff]
    %v116 = vld [vmem:[%s5 + $0x18] sm:$0xff]
    %v117 = vld [vmem:[%s5 + $0x20] sm:$0xff]
    %v118 = vld [vmem:[%s5 + $0x28] sm:$0xff]
    %v119 = vld [vmem:[%s5 + $0x30] sm:$0xff]
    %v120 = vld [vmem:[%s5 + $0x38] sm:$0xff]
    %v121 = vld [vmem:[%s5 + $0x40] sm:$0xff]
    %v122 = vld [vmem:[%s5 + $0x48] sm:$0xff]
    %v123 = vld [vmem:[%s5 + $0x50] sm:$0xff]
    %v124 = vld [vmem:[%s5 + $0x58] sm:$0xff]
    %v125 = vld [vmem:[%s5 + $0x60] sm:$0xff]
    %v126 = vld [vmem:[%s5 + $0x68] sm:$0xff]
    %v127 = vld [vmem:[%s5 + $0x70] sm:$0xff]
    %v128 = vld [vmem:[%s5 + $0x78] sm:$0xff]
    %v129 = vpack.c.bf16 %v114, %v113
    %v130 = vpack.c.bf16 %v116, %v115
    %v131 = vpack.c.bf16 %v118, %v117
    %v132 = vpack.c.bf16 %v120, %v119
    %v133 = vpack.c.bf16 %v122, %v121
    %v134 = vpack.c.bf16 %v124, %v123
    %v135 = vpack.c.bf16 %v126, %v125
    %v136 = vpack.c.bf16 %v128, %v127
    %v137 = vld [vmem:[%s6] sm:$0x1]
    %v139 = vrot.slane %v111, 1
    %v141 = vmax.f32 %v111, %v139
    %v142 = vrot.slane %v111, 2
    %v144 = vmax.f32 %v141, %v142
    %v145 = vrot.slane %v111, 3
    %v147 = vmax.f32 %v144, %v145
    %v148 = vrot.slane %v111, 4
    %v150 = vmax.f32 %v147, %v148
    %v151 = vrot.slane %v111, 5
    %v153 = vmax.f32 %v150, %v151
    %v154 = vrot.slane %v111, 6
    %v156 = vmax.f32 %v153, %v154
    %v157 = vrot.slane %v111, 7
    %v159 = vmax.f32 %v156, %v157
    %v160 = vpack.c.bf16 %v159, %v159
    %161 = vmatpush.bf16.msra.mxu0 %v136
    %162 = vmatpush.bf16.msra.mxu0 %v135
    %163 = vmatpush.bf16.msra.mxu0 %v134
    %164 = vmatpush.bf16.msra.mxu0 %v133
    %165 = vmatpush.bf16.msra.mxu0 %v132
    %166 = vmatpush.bf16.msra.mxu0 %v131
    %167 = vmatpush.bf16.msra.mxu0 %v130
    %168 = vmatpush.bf16.msra.mxu0 %v129
    %169 = vmatmul.bf16.gmra.mxu0 %v160
    %v170 = vpop.f32.mrf.mxu0
    %v171 = vadd.f32 %v137, %v170
    %v172 = vpop.f32.mrf.mxu0
    %173 = vdwg.mxu0
    %174 = vst [vmem:[#allocation2] sm:$0x1] %v171
    %v176 = vrot.slane %v112, 1
    %v178 = vmax.f32 %v112, %v176
    %v179 = vrot.slane %v112, 2
    %v181 = vmax.f32 %v178, %v179
    %v182 = vrot.slane %v112, 3
    %v184 = vmax.f32 %v181, %v182
    %v185 = vrot.slane %v112, 4
    %v187 = vmax.f32 %v184, %v185
    %v188 = vrot.slane %v112, 5
    %v190 = vmax.f32 %v187, %v188
    %v191 = vrot.slane %v112, 6
    %v193 = vmax.f32 %v190, %v191
    %v194 = vrot.slane %v112, 7
    %v196 = vmax.f32 %v193, %v194
    %v197 = vpack.c.bf16 %v196, %v196
    %198 = vmatpush.bf16.msra.mxu0 %v136
    %199 = vmatpush.bf16.msra.mxu0 %v135
    %200 = vmatpush.bf16.msra.mxu0 %v134
    %201 = vmatpush.bf16.msra.mxu0 %v133
    %202 = vmatpush.bf16.msra.mxu0 %v132
    %203 = vmatpush.bf16.msra.mxu0 %v131
    %204 = vmatpush.bf16.msra.mxu0 %v130
    %205 = vmatpush.bf16.msra.mxu0 %v129
    %206 = vmatmul.bf16.gmra.mxu0 %v197
    %v207 = vpop.f32.mrf.mxu0
    %v208 = vadd.f32 %v137, %v207
    %v209 = vpop.f32.mrf.mxu0
    %210 = vdwg.mxu0
    %211 = vst [vmem:[#allocation2 + $0x1] sm:$0x1] %v208
    // Predicated region
    $region30: #{pointnetpp_forward.5} parent=1 // pred_check
      _
    $region31: #{pointnetpp_forward.5} parent=1 // pred_check_branch
      %213 = sbr.rel (0) target = $region33
    $region32: #{pointnetpp_forward.5} parent=1 // pred_region
      %215 = vsyncadd [#allocation3], 0
      %s217 = sshll.u32 [#allocation2], 4
      %s218 = int_to_ptr.vmem [resolvable:$true] %s217
      %s219 = sshll.u32 %s7, 4
      %s220 = int_to_ptr.hbm [resolvable:$true] %s219
      %222 = dma.vmem_to_hbm [thread:$0]  %s218, 32, %s220, [#allocation3]
    $region33: #{pointnetpp_forward.5} parent=1 // pred_fallthru
      _
    // Predicated region
    $region34: #{pointnetpp_forward.5} parent=1 // pred_check
      _
    $region35: #{pointnetpp_forward.5} parent=1 // pred_check_branch
      %224 = sbr.rel (0) target = $region37
    $region36: #{pointnetpp_forward.5} parent=1 // pred_region
      %226 = dma.done [#allocation3], 32
    $region37: #{pointnetpp_forward.5} parent=1 // pred_fallthru
      _
    %227 = vsyncpa [#allocation3], 1

// kernel: pointnetpp_forward.4
$region0: #{pointnetpp_forward.4}
  #allocation0 [shape = 'u32[]', space=smem, size = 0x4, offset = 0x4, fixed_abs, tag = 'smem constant byte address 0x4 - core index']
  #allocation1 [shape = 'u32[72,128]{1,0:T(1,128)}', space=vmem, size = 0x9000, scoped, tag = 'internal scratch']
  %s0 = inlined_call_operand.vmem [shape: f32[128,35], index: 0, kind: input, shape index: {}]
  %s1 = inlined_call_operand.vmem [shape: f32[35,32], index: 1, kind: input, shape index: {}]
  %s2 = inlined_call_operand.vmem [shape: f32[1,32], index: 2, kind: input, shape index: {}]
  %s3 = inlined_call_operand.vmem [shape: f32[32,64], index: 3, kind: input, shape index: {}]
  %s4 = inlined_call_operand.vmem [shape: f32[1,64], index: 4, kind: input, shape index: {}]
  %s5 = inlined_call_operand.vmem [shape: f32[16,64], index: 5, kind: output, shape index: {}]
  %s6 = sld [smem:[#allocation0]]
  $region30: #{pointnetpp_forward.4} parent=0
    _
  %s8 = ssub.s32 1, %s6
  %s9 = scalar_select 0, %s8, %s6
  // Predicated region
  $region2: #{pointnetpp_forward.4} parent=0 // pred_check
    _
  $region3: #{pointnetpp_forward.4} parent=0 // pred_check_branch
    %11 = sbr.rel (0) target = $region5
  $region4: #{pointnetpp_forward.4} parent=0 // pred_region
    _
  $region5: #{pointnetpp_forward.4} parent=0 // pred_fallthru
    _
  // Predicated region
  $region6: #{pointnetpp_forward.4} parent=0 // pred_check
    _
  $region7: #{pointnetpp_forward.4} parent=0 // pred_check_branch
    %13 = sbr.rel (0) target = $region9
  $region8: #{pointnetpp_forward.4} parent=0 // pred_region
    _
  $region9: #{pointnetpp_forward.4} parent=0 // pred_fallthru
    _
  // Predicated region
  $region10: #{pointnetpp_forward.4} parent=0 // pred_check
    _
  $region11: #{pointnetpp_forward.4} parent=0 // pred_check_branch
    %15 = sbr.rel (0) target = $region13
  $region12: #{pointnetpp_forward.4} parent=0 // pred_region
    _
  $region13: #{pointnetpp_forward.4} parent=0 // pred_fallthru
    _
  // Predicated region
  $region14: #{pointnetpp_forward.4} parent=0 // pred_check
    _
  $region15: #{pointnetpp_forward.4} parent=0 // pred_check_branch
    %17 = sbr.rel (0) target = $region17
  $region16: #{pointnetpp_forward.4} parent=0 // pred_region
    _
  $region17: #{pointnetpp_forward.4} parent=0 // pred_fallthru
    _
  // Predicated region
  $region18: #{pointnetpp_forward.4} parent=0 // pred_check
    _
  $region19: #{pointnetpp_forward.4} parent=0 // pred_check_branch
    %19 = sbr.rel (0) target = $region21
  $region20: #{pointnetpp_forward.4} parent=0 // pred_region
    _
  $region21: #{pointnetpp_forward.4} parent=0 // pred_fallthru
    _
  %v21 = vld [vmem:[%s0] sm:$0xff]
  %v22 = vld [vmem:[%s0 + $0x8] sm:$0xff]
  %v23 = vld [vmem:[%s0 + $0x10] sm:$0xff]
  %v24 = vld [vmem:[%s0 + $0x18] sm:$0xff]
  %v25 = vld [vmem:[%s0 + $0x20] sm:$0xff]
  %v26 = vld [vmem:[%s0 + $0x28] sm:$0xff]
  %v27 = vld [vmem:[%s0 + $0x30] sm:$0xff]
  %v28 = vld [vmem:[%s0 + $0x38] sm:$0xff]
  %v29 = vld [vmem:[%s0 + $0x40] sm:$0xff]
  %v30 = vld [vmem:[%s0 + $0x48] sm:$0xff]
  %v31 = vld [vmem:[%s0 + $0x50] sm:$0xff]
  %v32 = vld [vmem:[%s0 + $0x58] sm:$0xff]
  %v33 = vld [vmem:[%s0 + $0x60] sm:$0xff]
  %v34 = vld [vmem:[%s0 + $0x68] sm:$0xff]
  %v35 = vld [vmem:[%s0 + $0x70] sm:$0xff]
  %v36 = vld [vmem:[%s0 + $0x78] sm:$0xff]
  %v37 = vld [vmem:[%s1] sm:$0xff]
  %v38 = vld [vmem:[%s1 + $0x8] sm:$0xff]
  %v39 = vld [vmem:[%s1 + $0x10] sm:$0xff]
  %v40 = vld [vmem:[%s1 + $0x18] sm:$0xff]
  %v41 = vld [vmem:[%s1 + $0x20] sm:$0x7]
  %v42 = vpack.c.bf16 %v38, %v37
  %v43 = vpack.c.bf16 %v40, %v39
  %v44 = vpack.c.bf16 %v41, %v41
  %v45 = vld [vmem:[%s2] sm:$0x1]
  %v46 = vpack.c.bf16 %v22, %v21
  %v47 = vpack.c.bf16 %v24, %v23
  %v48 = vpack.c.bf16 %v26, %v25
  %v49 = vpack.c.bf16 %v28, %v27
  %v50 = vpack.c.bf16 %v30, %v29
  %v51 = vpack.c.bf16 %v32, %v31
  %v52 = vpack.c.bf16 %v34, %v33
  %v53 = vpack.c.bf16 %v36, %v35
  %v55 = vperm.slane %v45, 0
  %vm57 = vcmask 285696
  %v59 = vsel %vm57, %v46, 0
  %v62 = vsel %vm57, %v47, 0
  %v65 = vsel %vm57, %v48, 0
  %v68 = vsel %vm57, %v49, 0
  %v71 = vsel %vm57, %v50, 0
  %v74 = vsel %vm57, %v51, 0
  %v77 = vsel %vm57, %v52, 0
  %v80 = vsel %vm57, %v53, 0
  %vm82 = vcmask 1040384
  %vm83 = vcmask 1041408
  %v84 = vsel %vm82, 4294967295, 65535
  %v85 = vsel %vm83, %v84, 0
  %v87 = vand.u32 %v44, %v85
  %89 = vmatpush.bf16.msra.mxu0 0
  %90 = vmatpush.bf16.msra.mxu0 0
  %91 = vmatpush.bf16.msra.mxu0 0
  %92 = vmatpush.bf16.msra.mxu0 0
  %93 = vmatpush.bf16.msra.mxu0 0
  %94 = vmatpush.bf16.msra.mxu0 %v87
  %95 = vmatpush.bf16.msra.mxu0 %v43
  %96 = vmatpush.bf16.msra.mxu0 %v42
  %97 = vmatmul.bf16.gmra.mxu0 %v59
  %v98 = vpop.f32.mrf.mxu0
  %v99 = vadd.f32 %v55, %v98
  %v100 = vpop.f32.mrf.mxu0
  %v101 = vadd.f32 %v55, %v100
  %102 = vmatmul.bf16.gmra.mxu0 %v62
  %v103 = vpop.f32.mrf.mxu0
  %v104 = vadd.f32 %v55, %v103
  %v105 = vpop.f32.mrf.mxu0
  %v106 = vadd.f32 %v55, %v105
  %107 = vmatmul.bf16.gmra.mxu0 %v65
  %v108 = vpop.f32.mrf.mxu0
  %v109 = vadd.f32 %v55, %v108
  %v110 = vpop.f32.mrf.mxu0
  %v111 = vadd.f32 %v55, %v110
  %112 = vmatmul.bf16.gmra.mxu0 %v68
  %v113 = vpop.f32.mrf.mxu0
  %v114 = vadd.f32 %v55, %v113
  %v115 = vpop.f32.mrf.mxu0
  %v116 = vadd.f32 %v55, %v115
  %117 = vmatmul.bf16.gmra.mxu0 %v71
  %v118 = vpop.f32.mrf.mxu0
  %v119 = vadd.f32 %v55, %v118
  %v120 = vpop.f32.mrf.mxu0
  %v121 = vadd.f32 %v55, %v120
  %122 = vmatmul.bf16.gmra.mxu0 %v74
  %v123 = vpop.f32.mrf.mxu0
  %v124 = vadd.f32 %v55, %v123
  %v125 = vpop.f32.mrf.mxu0
  %v126 = vadd.f32 %v55, %v125
  %127 = vmatmul.bf16.gmra.mxu0 %v77
  %v128 = vpop.f32.mrf.mxu0
  %v129 = vadd.f32 %v55, %v128
  %v130 = vpop.f32.mrf.mxu0
  %v131 = vadd.f32 %v55, %v130
  %132 = vmatmul.bf16.gmra.mxu0 %v80
  %v133 = vpop.f32.mrf.mxu0
  %v134 = vadd.f32 %v55, %v133
  %v135 = vpop.f32.mrf.mxu0
  %v136 = vadd.f32 %v55, %v135
  %137 = vdwg.mxu0
  %v138 = vmax.f32 %v99, 0.0
  %v139 = vmax.f32 %v101, 0.0
  %v140 = vmax.f32 %v104, 0.0
  %v141 = vmax.f32 %v106, 0.0
  %v142 = vmax.f32 %v109, 0.0
  %v143 = vmax.f32 %v111, 0.0
  %v144 = vmax.f32 %v114, 0.0
  %v145 = vmax.f32 %v116, 0.0
  %v146 = vmax.f32 %v119, 0.0
  %v147 = vmax.f32 %v121, 0.0
  %v148 = vmax.f32 %v124, 0.0
  %v149 = vmax.f32 %v126, 0.0
  %v150 = vmax.f32 %v129, 0.0
  %v151 = vmax.f32 %v131, 0.0
  %v152 = vmax.f32 %v134, 0.0
  %v153 = vmax.f32 %v136, 0.0
  %v154 = vld [vmem:[%s3] sm:$0xff]
  %v155 = vld [vmem:[%s3 + $0x8] sm:$0xff]
  %v156 = vld [vmem:[%s3 + $0x10] sm:$0xff]
  %v157 = vld [vmem:[%s3 + $0x18] sm:$0xff]
  %v158 = vpack.c.bf16 %v155, %v154
  %v159 = vpack.c.bf16 %v157, %v156
  %v160 = vld [vmem:[%s4] sm:$0x1]
  %v161 = vpack.c.bf16 %v139, %v138
  %v162 = vpack.c.bf16 %v141, %v140
  %v163 = vpack.c.bf16 %v143, %v142
  %v164 = vpack.c.bf16 %v145, %v144
  %v165 = vpack.c.bf16 %v147, %v146
  %v166 = vpack.c.bf16 %v149, %v148
  %v167 = vpack.c.bf16 %v151, %v150
  %v168 = vpack.c.bf16 %v153, %v152
  %v170 = vperm.slane %v160, 0
  %vm172 = vcmask 261120
  %v174 = vsel %vm172, %v161, 0
  %v177 = vsel %vm172, %v162, 0
  %v180 = vsel %vm172, %v163, 0
  %v183 = vsel %vm172, %v164, 0
  %v186 = vsel %vm172, %v165, 0
  %v189 = vsel %vm172, %v166, 0
  %v192 = vsel %vm172, %v167, 0
  %v195 = vsel %vm172, %v168, 0
  %197 = vmatpush.bf16.msra.mxu0 0
  %198 = vmatpush.bf16.msra.mxu0 0
  %199 = vmatpush.bf16.msra.mxu0 0
  %200 = vmatpush.bf16.msra.mxu0 0
  %201 = vmatpush.bf16.msra.mxu0 0
  %202 = vmatpush.bf16.msra.mxu0 0
  %203 = vmatpush.bf16.msra.mxu0 %v159
  %204 = vmatpush.bf16.msra.mxu0 %v158
  %205 = vmatmul.bf16.gmra.mxu0 %v174
  %v206 = vpop.f32.mrf.mxu0
  %v207 = vadd.f32 %v170, %v206
  %v208 = vpop.f32.mrf.mxu0
  %v209 = vadd.f32 %v170, %v208
  %210 = vmatmul.bf16.gmra.mxu0 %v177
  %v211 = vpop.f32.mrf.mxu0
  %v212 = vadd.f32 %v170, %v211
  %v213 = vpop.f32.mrf.mxu0
  %v214 = vadd.f32 %v170, %v213
  %215 = vmatmul.bf16.gmra.mxu0 %v180
  %v216 = vpop.f32.mrf.mxu0
  %v217 = vadd.f32 %v170, %v216
  %v218 = vpop.f32.mrf.mxu0
  %v219 = vadd.f32 %v170, %v218
  %220 = vmatmul.bf16.gmra.mxu0 %v183
  %v221 = vpop.f32.mrf.mxu0
  %v222 = vadd.f32 %v170, %v221
  %v223 = vpop.f32.mrf.mxu0
  %v224 = vadd.f32 %v170, %v223
  %225 = vmatmul.bf16.gmra.mxu0 %v186
  %v226 = vpop.f32.mrf.mxu0
  %v227 = vadd.f32 %v170, %v226
  %v228 = vpop.f32.mrf.mxu0
  %v229 = vadd.f32 %v170, %v228
  %230 = vmatmul.bf16.gmra.mxu0 %v189
  %v231 = vpop.f32.mrf.mxu0
  %v232 = vadd.f32 %v170, %v231
  %v233 = vpop.f32.mrf.mxu0
  %v234 = vadd.f32 %v170, %v233
  %235 = vmatmul.bf16.gmra.mxu0 %v192
  %v236 = vpop.f32.mrf.mxu0
  %v237 = vadd.f32 %v170, %v236
  %v238 = vpop.f32.mrf.mxu0
  %v239 = vadd.f32 %v170, %v238
  %240 = vmatmul.bf16.gmra.mxu0 %v195
  %v241 = vpop.f32.mrf.mxu0
  %v242 = vadd.f32 %v170, %v241
  %v243 = vpop.f32.mrf.mxu0
  %v244 = vadd.f32 %v170, %v243
  %245 = vdwg.mxu0
  %v246 = vmax.f32 %v207, 0.0
  %v247 = vmax.f32 %v209, 0.0
  %v248 = vmax.f32 %v212, 0.0
  %v249 = vmax.f32 %v214, 0.0
  %v250 = vmax.f32 %v217, 0.0
  %v251 = vmax.f32 %v219, 0.0
  %v252 = vmax.f32 %v222, 0.0
  %v253 = vmax.f32 %v224, 0.0
  %v254 = vmax.f32 %v227, 0.0
  %v255 = vmax.f32 %v229, 0.0
  %v256 = vmax.f32 %v232, 0.0
  %v257 = vmax.f32 %v234, 0.0
  %v258 = vmax.f32 %v237, 0.0
  %v259 = vmax.f32 %v239, 0.0
  %v260 = vmax.f32 %v242, 0.0
  %v261 = vmax.f32 %v244, 0.0
  %v262 = vmax.f32 %v246, %v247
  %v263 = vmax.f32 %v262, %v248
  %v264 = vmax.f32 %v263, %v249
  %v265 = vmax.f32 %v264, %v250
  %v266 = vmax.f32 %v265, %v251
  %v267 = vmax.f32 %v266, %v252
  %v268 = vmax.f32 %v267, %v253
  %vm269 = vcmask 523264
  %270 = vst.msk [vmem:[%s5] sm:$0xff] %vm269, %v268
  %v271 = vmax.f32 %v254, %v255
  %v272 = vmax.f32 %v271, %v256
  %v273 = vmax.f32 %v272, %v257
  %v274 = vmax.f32 %v273, %v258
  %v275 = vmax.f32 %v274, %v259
  %v276 = vmax.f32 %v275, %v260
  %v277 = vmax.f32 %v276, %v261
  %278 = vst.msk [vmem:[%s5 + $0x8] sm:$0xff] %vm269, %v277
  // Predicated region
  $region22: #{pointnetpp_forward.4} parent=0 // pred_check
    _
  $region23: #{pointnetpp_forward.4} parent=0 // pred_check_branch
    %280 = sbr.rel (0) target = $region25
  $region24: #{pointnetpp_forward.4} parent=0 // pred_region
    _
  $region25: #{pointnetpp_forward.4} parent=0 // pred_fallthru
    _
  // Predicated region
  $region26: #{pointnetpp_forward.4} parent=0 // pred_check
    _
  $region27: #{pointnetpp_forward.4} parent=0 // pred_check_branch
    %282 = sbr.rel (0) target = $region29
  $region28: #{pointnetpp_forward.4} parent=0 // pred_region
    _
  $region29: #{pointnetpp_forward.4} parent=0 // pred_fallthru
    _

</llo_original>
